<compile_context>
chip_gen: v5e
topology: v5e:2x2
jax: 0.10.0
libtpu: 0.0.40
codegen_flags: <defaults>
</compile_context>

<pallas_src>
import jax
import jax.numpy as jnp
from jax.experimental import pallas as pl
from jax.experimental.pallas import tpu as pltpu


def _make_kernel(tm, steps, M, H_out, needs_mask, two_d_grid):
    """Kernel closure over static tiling parameters."""
    num_full_tiles = M // tm  # tiles whose rows are all < M (no masking needed)

    def kernel(x_ref, w_ref, b_ref, out_ref, psum_ref, psumsq_ref):
        if two_d_grid:
            c = pl.program_id(0)        # outer chunk axis (one per TensorCore)
            i = pl.program_id(1)        # inner row-tile axis (arbitrary)
            tile_idx = c * steps + i
        else:
            i = pl.program_id(0)
            tile_idx = i

        # ---- Linear layer hot path on the MXU (f32 accumulation). ----
        y = jnp.dot(x_ref[...], w_ref[...], preferred_element_type=jnp.float32)
        y = y + b_ref[...]                       # (tm, H_out) + (1, H_out)
        out_ref[...] = y.astype(out_ref.dtype)   # OOB rows of partial block dropped

        @pl.when(i == 0)
        def _():
            psum_ref[...] = jnp.zeros_like(psum_ref)
            psumsq_ref[...] = jnp.zeros_like(psumsq_ref)

        def _accumulate(vals):
            # Layout-preserving reshape: last two dims stay (8, H_out) vreg
            # tiles, so the axis-0 sum is a plain VALU tree-add (no XLU work).
            v3 = vals.reshape(tm // 8, 8, H_out)
            psum_ref[...] += jnp.sum(v3, axis=0)
            psumsq_ref[...] += jnp.sum(v3 * v3, axis=0)

        if needs_mask:
            # Only the tail tile(s) pay the iota/select passes; full tiles take
            # the cheap path (v7x: keeps the loop on the HBM roofline).
            @pl.when(tile_idx < num_full_tiles)
            def _():
                _accumulate(y)

            @pl.when(tile_idx >= num_full_tiles)
            def _():
                row = jax.lax.broadcasted_iota(jnp.int32, (tm, 1), 0)
                valid = (tile_idx * tm + row) < M
                _accumulate(jnp.where(valid, y, 0.0))
        else:
            _accumulate(y)

    return kernel


def analysis_linear_forward(x, w, b, *, tm=4096, num_chunks=1, core_parallel=True):
    """Fused Linear forward + per-feature activation statistics.

    x: (B, S, H_in) float32; w: (H_in, H_out); b: (H_out,).
    num_chunks: 1 on single-TensorCore chips (v5e/v6e); 2 on v7x to split the
      row loop across both TensorCores (outer axis marked CORE_PARALLEL when
      core_parallel=True).
    Returns (output (B, S, H_out), num_activations,
             sum_activations (H_out,), sum_squared_activations (H_out,)).
    """
    B, S, H_in = x.shape
    H_out = w.shape[1]
    M = B * S

    # Row tile: multiple of 8, no larger than the (8-padded) row count.
    m8 = ((M + 7) // 8) * 8
    tm = int(tm)
    tm = max(8, min(tm - tm % 8, m8))

    total_tiles = -(-M // tm)                       # cdiv
    num_chunks = max(1, min(int(num_chunks), total_tiles))

    x2 = x.reshape(M, H_in)
    b2 = b.reshape(1, H_out)

    if num_chunks == 1:
        steps = total_tiles
        grid = (total_tiles,)
        covered = total_tiles * tm
    else:
        steps = -(-total_tiles // num_chunks)
        num_chunks = -(-total_tiles // steps)       # drop now-empty chunks
        grid = (num_chunks, steps)
        covered = num_chunks * steps * tm

    needs_mask = covered != M
    kernel = _make_kernel(tm, steps, M, H_out, needs_mask, num_chunks > 1)

    if num_chunks == 1:
        in_specs = [
            pl.BlockSpec((tm, H_in), lambda i: (i, 0)),      # x rows
            pl.BlockSpec((H_in, H_out), lambda i: (0, 0)),   # weight (resident)
            pl.BlockSpec((1, H_out), lambda i: (0, 0)),      # bias (resident)
        ]
        out_specs = [
            pl.BlockSpec((tm, H_out), lambda i: (i, 0)),     # output rows
            pl.BlockSpec((8, H_out), lambda i: (0, 0)),      # sum accumulator
            pl.BlockSpec((8, H_out), lambda i: (0, 0)),      # sumsq accumulator
        ]
        dim_sem = ("arbitrary",)
    else:
        last_tile = total_tiles - 1

        def row_map(c, i):
            # Clamp so a fully-out-of-range step (unbalanced last chunk) just
            # re-touches the last real tile; its rows are masked out of the
            # stats by tile_idx*tm + row >= M, and the rewritten output block
            # carries identical values.
            return (jnp.minimum(c * steps + i, last_tile), 0)

        in_specs = [
            pl.BlockSpec((tm, H_in), row_map),
            pl.BlockSpec((H_in, H_out), lambda c, i: (0, 0)),
            pl.BlockSpec((1, H_out), lambda c, i: (0, 0)),
        ]
        out_specs = [
            pl.BlockSpec((tm, H_out), row_map),
            pl.BlockSpec((8, H_out), lambda c, i: (c, 0)),   # per-chunk sum
            pl.BlockSpec((8, H_out), lambda c, i: (c, 0)),   # per-chunk sumsq
        ]
        # CORE_PARALLEL actually splits the outer axis across TensorCores
        # (plain "parallel" does not change codegen); fall back to "parallel"
        # when the caller wants a portable single-core-safe variant.
        if core_parallel:
            dim_sem = (pltpu.CORE_PARALLEL, pltpu.ARBITRARY)
        else:
            dim_sem = ("parallel", "arbitrary")

    out, psum, psumsq = pl.pallas_call(
        kernel,
        out_shape=(
            jax.ShapeDtypeStruct((M, H_out), x.dtype),
            jax.ShapeDtypeStruct((num_chunks * 8, H_out), jnp.float32),
            jax.ShapeDtypeStruct((num_chunks * 8, H_out), jnp.float32),
        ),
        grid_spec=pltpu.PrefetchScalarGridSpec(
            num_scalar_prefetch=0,
            grid=grid,
            in_specs=in_specs,
            out_specs=out_specs,
        ),
        compiler_params=pltpu.CompilerParams(dimension_semantics=dim_sem),
        # At tm<=4096 the double-buffered working set (~9 MiB) fits the scoped
        # VMEM default on every generation; raise tm + vmem_limit_bytes on
        # v6e/v7x if profiling shows per-step overhead still exposed.
    )(x2, w, b2)

    # Tiny final reductions (over chunks and sublane folds) in XLA.
    sum_activations = psum.sum(axis=0)
    sum_squared_activations = psumsq.sum(axis=0)

    out = out.reshape(B, S, H_out)
    num_activations = M
    # TODO(synk): store_activations / running cross-call accumulation of
    # num/sum/sum_squared is host-side Python state in the PyTorch wrapper;
    # here the per-call statistics are returned for the caller to accumulate.
    return out, num_activations, sum_activations, sum_squared_activations


def _reference(x, w, b):
    out = x @ w + b
    flat = out.reshape(-1, out.shape[-1])
    return out, flat.shape[0], flat.sum(axis=0), (flat ** 2).sum(axis=0)


def _check_case(key, B, S, H_in, H_out, **kw):
    kx, kw_, kb = jax.random.split(key, 3)
    x = jax.random.normal(kx, (B, S, H_in), dtype=jnp.float32)
    w = jax.random.normal(kw_, (H_in, H_out), dtype=jnp.float32) * 0.05
    b = jax.random.normal(kb, (H_out,), dtype=jnp.float32) * 0.01

    out, n_act, s_act, ss_act = analysis_linear_forward(x, w, b, **kw)
    jax.block_until_ready((out, s_act, ss_act))

    ref_out, ref_n, ref_sum, ref_ssq = _reference(x, w, b)
    assert n_act == ref_n
    assert jnp.allclose(out, ref_out, atol=1e-5, rtol=1e-5)
    assert jnp.allclose(s_act, ref_sum, atol=1e-4, rtol=1e-5)
    assert jnp.allclose(ss_act, ref_ssq, atol=1e-4, rtol=1e-5)

    # Derived stats equivalent to get_mean_activations / get_variance_activations.
    mean_act = s_act / n_act
    var_act = ss_act / n_act - mean_act ** 2
    jax.block_until_ready((mean_act, var_act))


if __name__ == "__main__":
    key = jax.random.PRNGKey(0)
    k1, k2, k3, k4 = jax.random.split(key, 4)

    # Primary shape implied by the module: batch=2, seq=8, hidden_in=32, out=128.
    _check_case(k1, B=2, S=8, H_in=32, H_out=128)
    # Non-divisible row count -> partial tail block + gated stats masking
    # (no wrapper-side pad / slice anymore).
    _check_case(k2, B=3, S=7, H_in=32, H_out=128, tm=8)
    # Multi-tile single chunk (v5e/v6e default path).
    _check_case(k3, B=4, S=64, H_in=32, H_out=128, tm=64)
    # Multi-chunk path with ragged tail (v7x-style split; plain "parallel"
    # here so the test also runs on single-TensorCore chips).
    _check_case(k4, B=3, S=7, H_in=32, H_out=128, tm=8, num_chunks=2,
                core_parallel=False)

    print("KERNEL_OK")
</pallas_src>

<mosaic_0001>
module attributes {stable_mosaic.version = 11 : i64} {
  func.func @kernel(%arg0: i32, %arg1: memref<16x32xf32, #tpu.memory_space<vmem>>, %arg2: memref<32x128xf32, #tpu.memory_space<vmem>>, %arg3: memref<1x128xf32, #tpu.memory_space<vmem>>, %arg4: memref<16x128xf32, #tpu.memory_space<vmem>>, %arg5: memref<8x128xf32, #tpu.memory_space<vmem>>, %arg6: memref<8x128xf32, #tpu.memory_space<vmem>>) attributes {dimension_semantics = [#tpu.dimension_semantics<arbitrary>], iteration_bounds = array<i64: 1>, scalar_prefetch = 0 : i64, scratch_operands = 0 : i64, tpu.core_type = #tpu.core_type<tc>, window_params = [{transform_indices = @transform_0, window_bounds = array<i64: 16, 32>}, {pipeline_mode = #tpu.pipeline_mode<synchronous>, transform_indices = @transform_1, window_bounds = array<i64: 32, 128>}, {pipeline_mode = #tpu.pipeline_mode<synchronous>, transform_indices = @transform_2, window_bounds = array<i64: 1, 128>}, {transform_indices = @transform_3, window_bounds = array<i64: 16, 128>}, {pipeline_mode = #tpu.pipeline_mode<synchronous>, transform_indices = @transform_4, window_bounds = array<i64: 8, 128>}, {pipeline_mode = #tpu.pipeline_mode<synchronous>, transform_indices = @transform_5, window_bounds = array<i64: 8, 128>}]} {
    %c0 = arith.constant 0 : index
    %c0_0 = arith.constant 0 : index
    %0 = vector.load %arg1[%c0, %c0_0] : memref<16x32xf32, #tpu.memory_space<vmem>>, vector<16x32xf32>
    %c0_1 = arith.constant 0 : index
    %c0_2 = arith.constant 0 : index
    %1 = vector.load %arg2[%c0_1, %c0_2] : memref<32x128xf32, #tpu.memory_space<vmem>>, vector<32x128xf32>
    %cst = arith.constant dense<0.000000e+00> : vector<16x128xf32>
    %2 = tpu.matmul %0, %1, %cst {dimension_numbers = #tpu.dot_dimension_numbers<[1], [0], [0], [1], [0, 0, 1, 1], [], []>} : vector<16x32xf32>, vector<32x128xf32>, vector<16x128xf32> -> vector<16x128xf32>
    %c0_3 = arith.constant 0 : index
    %c0_4 = arith.constant 0 : index
    %3 = vector.load %arg3[%c0_3, %c0_4] : memref<1x128xf32, #tpu.memory_space<vmem>>, vector<1x128xf32>
    %4 = vector.broadcast %3 : vector<1x128xf32> to vector<16x128xf32>
    %5 = arith.addf %2, %4 : vector<16x128xf32>
    %c0_5 = arith.constant 0 : index
    %c0_6 = arith.constant 0 : index
    %6 = vector.load %arg4[%c0_5, %c0_6] : memref<16x128xf32, #tpu.memory_space<vmem>>, vector<16x128xf32>
    tpu.vector_store %arg4[%c0_5, %c0_6], %5 {strides = array<i32>} : memref<16x128xf32, #tpu.memory_space<vmem>>, vector<16x128xf32>,
    %c0_i32 = arith.constant 0 : i32
    %7 = arith.cmpi eq, %arg0, %c0_i32 : i32
    %8 = arith.extui %7 : i1 to i32
    %c0_i32_7 = arith.constant 0 : i32
    %9 = arith.cmpi ne, %8, %c0_i32_7 : i32
    scf.if %9 {
      %cst_18 = arith.constant 0.000000e+00 : f32
      %20 = vector.broadcast %cst_18 : f32 to vector<8x128xf32>
      %c0_19 = arith.constant 0 : index
      %c0_20 = arith.constant 0 : index
      %21 = vector.load %arg5[%c0_19, %c0_20] : memref<8x128xf32, #tpu.memory_space<vmem>>, vector<8x128xf32>
      tpu.vector_store %arg5[%c0_19, %c0_20], %20 {strides = array<i32>} : memref<8x128xf32, #tpu.memory_space<vmem>>, vector<8x128xf32>,
      %cst_21 = arith.constant 0.000000e+00 : f32
      %22 = vector.broadcast %cst_21 : f32 to vector<8x128xf32>
      %c0_22 = arith.constant 0 : index
      %c0_23 = arith.constant 0 : index
      %23 = vector.load %arg6[%c0_22, %c0_23] : memref<8x128xf32, #tpu.memory_space<vmem>>, vector<8x128xf32>
      tpu.vector_store %arg6[%c0_22, %c0_23], %22 {strides = array<i32>} : memref<8x128xf32, #tpu.memory_space<vmem>>, vector<8x128xf32>,
    } else {
    }
    %10 = vector.shape_cast %5 : vector<16x128xf32> to vector<2x8x128xf32>
    %c0_8 = arith.constant 0 : index
    %c0_9 = arith.constant 0 : index
    %11 = vector.load %arg5[%c0_8, %c0_9] : memref<8x128xf32, #tpu.memory_space<vmem>>, vector<8x128xf32>
    %cst_10 = arith.constant dense<0.000000e+00> : vector<8x128xf32>
    %12 = vector.multi_reduction <add>, %10, %cst_10 [0] : vector<2x8x128xf32> to vector<8x128xf32>
    %13 = arith.addf %11, %12 : vector<8x128xf32>
    %c0_11 = arith.constant 0 : index
    %c0_12 = arith.constant 0 : index
    %14 = vector.load %arg5[%c0_11, %c0_12] : memref<8x128xf32, #tpu.memory_space<vmem>>, vector<8x128xf32>
    tpu.vector_store %arg5[%c0_11, %c0_12], %13 {strides = array<i32>} : memref<8x128xf32, #tpu.memory_space<vmem>>, vector<8x128xf32>,
    %c0_13 = arith.constant 0 : index
    %c0_14 = arith.constant 0 : index
    %15 = vector.load %arg6[%c0_13, %c0_14] : memref<8x128xf32, #tpu.memory_space<vmem>>, vector<8x128xf32>
    %16 = arith.mulf %10, %10 : vector<2x8x128xf32>
    %cst_15 = arith.constant dense<0.000000e+00> : vector<8x128xf32>
    %17 = vector.multi_reduction <add>, %16, %cst_15 [0] : vector<2x8x128xf32> to vector<8x128xf32>
    %18 = arith.addf %15, %17 : vector<8x128xf32>
    %c0_16 = arith.constant 0 : index
    %c0_17 = arith.constant 0 : index
    %19 = vector.load %arg6[%c0_16, %c0_17] : memref<8x128xf32, #tpu.memory_space<vmem>>, vector<8x128xf32>
    tpu.vector_store %arg6[%c0_16, %c0_17], %18 {strides = array<i32>} : memref<8x128xf32, #tpu.memory_space<vmem>>, vector<8x128xf32>,
    return
  }
  func.func @transform_0(%arg0: i32) -> (i32, i32) {
    %c0_i32 = arith.constant 0 : i32
    %c0_i32_0 = arith.constant 0 : i32
    return %arg0, %c0_i32 : i32, i32
  }
  func.func @transform_1(%arg0: i32) -> (i32, i32) {
    %c0_i32 = arith.constant 0 : i32
    %c0_i32_0 = arith.constant 0 : i32
    %c0_i32_1 = arith.constant 0 : i32
    return %c0_i32, %c0_i32_0 : i32, i32
  }
  func.func @transform_2(%arg0: i32) -> (i32, i32) {
    %c0_i32 = arith.constant 0 : i32
    %c0_i32_0 = arith.constant 0 : i32
    %c0_i32_1 = arith.constant 0 : i32
    return %c0_i32, %c0_i32_0 : i32, i32
  }
  func.func @transform_3(%arg0: i32) -> (i32, i32) {
    %c0_i32 = arith.constant 0 : i32
    %c0_i32_0 = arith.constant 0 : i32
    return %arg0, %c0_i32 : i32, i32
  }
  func.func @transform_4(%arg0: i32) -> (i32, i32) {
    %c0_i32 = arith.constant 0 : i32
    %c0_i32_0 = arith.constant 0 : i32
    %c0_i32_1 = arith.constant 0 : i32
    return %c0_i32, %c0_i32_0 : i32, i32
  }
  func.func @transform_5(%arg0: i32) -> (i32, i32) {
    %c0_i32 = arith.constant 0 : i32
    %c0_i32_0 = arith.constant 0 : i32
    %c0_i32_1 = arith.constant 0 : i32
    return %c0_i32, %c0_i32_0 : i32, i32
  }
}

</mosaic_0001>

<llo_original>
// kernel: tpu_custom_call.1
$region0: #{tpu_custom_call.1}
  #allocation0 [shape = 'u32[]', space=smem, size = 0x4, offset = 0x4, fixed_abs, tag = 'smem constant byte address 0x4 - core index']
  #allocation1 [shape = 'u32[72,128]{1,0:T(1,128)}', space=vmem, size = 0x9000, scoped, tag = 'internal scratch']
  %s0 = inlined_call_operand.hbm [shape: f32[16,32], index: 0, kind: input, shape index: {}]
  %s1 = inlined_call_operand.hbm [shape: f32[32,128], index: 1, kind: input, shape index: {}]
  %s2 = inlined_call_operand.vmem [shape: f32[1,128], index: 2, kind: input, shape index: {}]
  %s3 = inlined_call_operand.hbm [shape: f32[16,128], index: 3, kind: output, shape index: {0}]
  %s4 = inlined_call_operand.hbm [shape: f32[8,128], index: 4, kind: output, shape index: {1}]
  %s5 = inlined_call_operand.hbm [shape: f32[8,128], index: 5, kind: output, shape index: {2}]
  %6 = xla_tuple %s3, %s4, %s5
  %s7 = sld [smem:[#allocation0]]
  $region50: #{tpu_custom_call.1} parent=0
    _
  %s9 = ssub.s32 1, %s7
  %s10 = scalar_select 0, %s9, %s7
  $region1: #{tpu_custom_call.1} parent=0
    #allocation2 [shape = 'u8[8192]{0}', space=vmem, size = 0x2000, scoped, tag = 'input window, operand 0, single buffered']
    #allocation3 [shape = 's32[1]{0}', space=sflag, size = 0x4, scoped, tag = 'scoped memory for tpu_custom_call.1']
    #allocation4 [shape = 's32[1]{0}', space=sflag, size = 0x4, scoped, tag = 'scoped memory for tpu_custom_call.1']
    #allocation5 [shape = 'u8[16384]{0}', space=vmem, size = 0x4000, scoped, tag = 'input window, operand 1, single buffered']
    #allocation6 [shape = 's32[1]{0}', space=sflag, size = 0x4, scoped, tag = 'scoped memory for tpu_custom_call.1']
    #allocation7 [shape = 'u8[8192]{0}', space=vmem, size = 0x2000, scoped, tag = 'output window, operand 0, single buffered']
    #allocation8 [shape = 'u8[4096]{0}', space=vmem, size = 0x1000, scoped, tag = 'output window, operand 1, single buffered']
    #allocation9 [shape = 's32[1]{0}', space=sflag, size = 0x4, scoped, tag = 'scoped memory for tpu_custom_call.1']
    #allocation10 [shape = 'u8[4096]{0}', space=vmem, size = 0x1000, scoped, tag = 'output window, operand 2, single buffered']
    %11 = vsyncpa [#allocation3], 0
    %12 = vsyncpa [#allocation6], 0
    %13 = vsyncpa [#allocation4], 0
    %14 = vsyncpa [#allocation9], 0
    // Predicated region
    $region2: #{tpu_custom_call.1} parent=1 // pred_check
      _
    $region3: #{tpu_custom_call.1} parent=1 // pred_check_branch
      %16 = sbr.rel (0) target = $region5
    $region4: #{tpu_custom_call.1} parent=1 // pred_region
      %18 = vsyncadd [#allocation3], 0
      %s19 = sshll.u32 %s0, 4
      %s20 = int_to_ptr.hbm [resolvable:$true] %s19
      %s21 = sshll.u32 [#allocation2], 4
      %s22 = int_to_ptr.vmem [resolvable:$true] %s21
      %27 = dma.hbm_to_vmem [thread:$0]  %s20, 256, %s22, [#allocation3], 128, 128, 8
    $region5: #{tpu_custom_call.1} parent=1 // pred_fallthru
      _
    // Predicated region
    $region6: #{tpu_custom_call.1} parent=1 // pred_check
      _
    $region7: #{tpu_custom_call.1} parent=1 // pred_check_branch
      %29 = sbr.rel (0) target = $region9
    $region8: #{tpu_custom_call.1} parent=1 // pred_region
      %31 = vsyncadd [#allocation6], 0
      %s32 = sshll.u32 %s1, 4
      %s33 = int_to_ptr.hbm [resolvable:$true] %s32
      %s34 = sshll.u32 [#allocation5], 4
      %s35 = int_to_ptr.vmem [resolvable:$true] %s34
      %40 = dma.hbm_to_vmem [thread:$0]  %s33, 512, %s35, [#allocation6], 128, 128, 8
    $region9: #{tpu_custom_call.1} parent=1 // pred_fallthru
      _
    // Predicated region
    $region10: #{tpu_custom_call.1} parent=1 // pred_check
      _
    $region11: #{tpu_custom_call.1} parent=1 // pred_check_branch
      %42 = sbr.rel (0) target = $region13
    $region12: #{tpu_custom_call.1} parent=1 // pred_region
      _
    $region13: #{tpu_custom_call.1} parent=1 // pred_fallthru
      _
    // Predicated region
    $region14: #{tpu_custom_call.1} parent=1 // pred_check
      _
    $region15: #{tpu_custom_call.1} parent=1 // pred_check_branch
      %44 = sbr.rel (0) target = $region17
    $region16: #{tpu_custom_call.1} parent=1 // pred_region
      %46 = dma.done [#allocation3], 256
    $region17: #{tpu_custom_call.1} parent=1 // pred_fallthru
      _
    // Predicated region
    $region18: #{tpu_custom_call.1} parent=1 // pred_check
      _
    $region19: #{tpu_custom_call.1} parent=1 // pred_check_branch
      %48 = sbr.rel (0) target = $region21
    $region20: #{tpu_custom_call.1} parent=1 // pred_region
      %50 = dma.done [#allocation6], 512
    $region21: #{tpu_custom_call.1} parent=1 // pred_fallthru
      _
    %v51 = vld [vmem:[#allocation2] sm:$0xff]
    %v52 = vld [vmem:[#allocation2 + $0x8] sm:$0xff]
    %v53 = vld [vmem:[#allocation5] sm:$0xff]
    %v54 = vld [vmem:[#allocation5 + $0x8] sm:$0xff]
    %v55 = vld [vmem:[#allocation5 + $0x10] sm:$0xff]
    %v56 = vld [vmem:[#allocation5 + $0x18] sm:$0xff]
    %v57 = vld [vmem:[%s2] sm:$0x1]
    %v59 = vperm.slane %v57, 0
    %vm61 = vcmask 261120
    %v63 = vsel %vm61, %v51, 0
    %v66 = vsel %vm61, %v52, 0
    %68 = vmatpush.msra.mxu0 0.0
    %69 = vmatpush.msra.mxu0 0.0
    %70 = vmatpush.msra.mxu0 0.0
    %71 = vmatpush.msra.mxu0 0.0
    %72 = vmatpush.msra.mxu0 0.0
    %73 = vmatpush.msra.mxu0 0.0
    %74 = vmatpush.msra.mxu0 0.0
    %75 = vmatpush.msra.mxu0 0.0
    %76 = vmatpush.msra.mxu0 0.0
    %77 = vmatpush.msra.mxu0 0.0
    %78 = vmatpush.msra.mxu0 0.0
    %79 = vmatpush.msra.mxu0 0.0
    %80 = vmatpush.msra.mxu0 %v56
    %81 = vmatpush.msra.mxu0 %v55
    %82 = vmatpush.msra.mxu0 %v54
    %83 = vmatpush.msra.mxu0 %v53
    %84 = vmatmul.f32.gmra.mxu0 %v63
    %v85 = vpop.f32.mrf.mxu0
    %v86 = vadd.f32 %v59, %v85
    %87 = vmatmul.f32.gmra.mxu0 %v66
    %v88 = vpop.f32.mrf.mxu0
    %v89 = vadd.f32 %v59, %v88
    %90 = vdwg.mxu0
    %91 = vst [vmem:[#allocation7] sm:$0xff] %v86
    %92 = vst [vmem:[#allocation7 + $0x8] sm:$0xff] %v89
    %p93 = scmp.eq.s32.totalorder 0, 0
    // Predicated region
    $region22: #{tpu_custom_call.1} parent=1 // pred_check
      %p94 = pneg %p93
    $region23: #{tpu_custom_call.1} parent=1 // pred_check_branch
      %96 = sbr.rel (%p94) target = $region25
    $region24: #{tpu_custom_call.1} parent=1 // pred_region
      %97 = vst [vmem:[#allocation8] sm:$0xff] 0.0
      %98 = vst [vmem:[#allocation10] sm:$0xff] 0.0
    $region25: #{tpu_custom_call.1} parent=1 // pred_fallthru
      _
    %v99 = vld [vmem:[#allocation8] sm:$0xff]
    %v100 = vadd.f32 %v86, %v89
    %v101 = vadd.f32 %v99, %v100
    %102 = vst [vmem:[#allocation8] sm:$0xff] %v101
    %v103 = vld [vmem:[#allocation10] sm:$0xff]
    %v104 = vmul.f32 %v86, %v86
    %v105 = vmul.f32 %v89, %v89
    %v106 = vadd.f32 %v104, %v105
    %v107 = vadd.f32 %v103, %v106
    %108 = vst [vmem:[#allocation10] sm:$0xff] %v107
    // Predicated region
    $region26: #{tpu_custom_call.1} parent=1 // pred_check
      _
    $region27: #{tpu_custom_call.1} parent=1 // pred_check_branch
      %110 = sbr.rel (0) target = $region29
    $region28: #{tpu_custom_call.1} parent=1 // pred_region
      %112 = vsyncadd [#allocation4], 0
      %s113 = sshll.u32 [#allocation7], 4
      %s114 = int_to_ptr.vmem [resolvable:$true] %s113
      %s115 = sshll.u32 %s3, 4
      %s116 = int_to_ptr.hbm [resolvable:$true] %s115
      %121 = dma.vmem_to_hbm [thread:$0]  %s114, 256, %s116, [#allocation4], 128, 128, 8
    $region29: #{tpu_custom_call.1} parent=1 // pred_fallthru
      _
    // Predicated region
    $region30: #{tpu_custom_call.1} parent=1 // pred_check
      _
    $region31: #{tpu_custom_call.1} parent=1 // pred_check_branch
      %123 = sbr.rel (0) target = $region33
    $region32: #{tpu_custom_call.1} parent=1 // pred_region
      %125 = vsyncadd [#allocation9], 0
      %s127 = sshll.u32 [#allocation8], 4
      %s128 = int_to_ptr.vmem [resolvable:$true] %s127
      %s129 = sshll.u32 %s4, 4
      %s130 = int_to_ptr.hbm [resolvable:$true] %s129
      %132 = dma.vmem_to_hbm [thread:$0]  %s128, 128, %s130, [#allocation9]
    $region33: #{tpu_custom_call.1} parent=1 // pred_fallthru
      _
    // Predicated region
    $region34: #{tpu_custom_call.1} parent=1 // pred_check
      _
    $region35: #{tpu_custom_call.1} parent=1 // pred_check_branch
      %134 = sbr.rel (0) target = $region37
    $region36: #{tpu_custom_call.1} parent=1 // pred_region
      %136 = vsyncadd [#allocation9], 0
      %s138 = sshll.u32 [#allocation10], 4
      %s139 = int_to_ptr.vmem [resolvable:$true] %s138
      %s140 = sshll.u32 %s5, 4
      %s141 = int_to_ptr.hbm [resolvable:$true] %s140
      %143 = dma.vmem_to_hbm [thread:$0]  %s139, 128, %s141, [#allocation9]
    $region37: #{tpu_custom_call.1} parent=1 // pred_fallthru
      _
    // Predicated region
    $region38: #{tpu_custom_call.1} parent=1 // pred_check
      _
    $region39: #{tpu_custom_call.1} parent=1 // pred_check_branch
      %145 = sbr.rel (0) target = $region41
    $region40: #{tpu_custom_call.1} parent=1 // pred_region
      %147 = dma.done [#allocation4], 256
    $region41: #{tpu_custom_call.1} parent=1 // pred_fallthru
      _
    // Predicated region
    $region42: #{tpu_custom_call.1} parent=1 // pred_check
      _
    $region43: #{tpu_custom_call.1} parent=1 // pred_check_branch
      %149 = sbr.rel (0) target = $region45
    $region44: #{tpu_custom_call.1} parent=1 // pred_region
      %151 = dma.done [#allocation9], 128
    $region45: #{tpu_custom_call.1} parent=1 // pred_fallthru
      _
    // Predicated region
    $region46: #{tpu_custom_call.1} parent=1 // pred_check
      _
    $region47: #{tpu_custom_call.1} parent=1 // pred_check_branch
      %153 = sbr.rel (0) target = $region49
    $region48: #{tpu_custom_call.1} parent=1 // pred_region
      %155 = dma.done [#allocation9], 128
    $region49: #{tpu_custom_call.1} parent=1 // pred_fallthru
      _
    %156 = vsyncpa [#allocation3], 1
    %157 = vsyncpa [#allocation6], 1
    %158 = vsyncpa [#allocation4], 1
    %159 = vsyncpa [#allocation9], 1

</llo_original>
